<compile_context>
chip_gen: v5e
topology: v5e:2x2
jax: 0.10.0
libtpu: 0.0.40
codegen_flags: <defaults>
</compile_context>

<pallas_src>
import functools

import jax
import jax.numpy as jnp
import numpy as np
from jax.experimental import pallas as pl
from jax.experimental.pallas import tpu as pltpu

BN_EPS = 1e-5
_LANE = 128
_BF16_SUBLANE = 16          # bf16 packs 16 sublanes per vreg


def _round_up(n, m):
    return ((n + m - 1) // m) * m


def _physical_vmem_bytes():
    """Per-core physical VMEM, generation-aware with safe fallbacks."""
    try:
        return int(pltpu.get_tpu_info().vmem_capacity_bytes)
    except Exception:
        pass
    try:
        kind = jax.devices()[0].device_kind.lower()
        if "v7" in kind:
            return 64 << 20
    except Exception:
        pass
    return 128 << 20


def _vmem_budget():
    """Usable VMEM budget: leave headroom for Mosaic scratch / bookkeeping."""
    return min(int(_physical_vmem_bytes() * 0.78), 100 << 20)


# --------------------------------------------------------------------------
# Single fused kernel: whole (feature-padded) batch resident in VMEM.
# --------------------------------------------------------------------------
def _fused_block_kernel(x_ref, w1t_ref, g1_ref, b1_ref, w2t_ref, g2_ref,
                        b2_ref, o_ref, *, batch, residual):
    inv_n = jnp.float32(1.0 / batch)
    x = x_ref[...]                                              # (B, Fp) bf16

    # fc1: weights pre-transposed to (in, out), bf16 MXU path, f32 accumulate.
    z = jnp.dot(x, w1t_ref[...], preferred_element_type=jnp.float32)

    # bn1: single-pass batch stats (sum, sum of squares). Padded feature
    # columns are all-zero and normalize to zero (no NaN: rsqrt(eps)).
    s = jnp.sum(z, axis=0, keepdims=True)
    q = jnp.sum(z * z, axis=0, keepdims=True)
    mu = s * inv_n
    var = q * inv_n - mu * mu
    scale = jax.lax.rsqrt(var + BN_EPS) * g1_ref[...]
    shift = b1_ref[...] - mu * scale
    h = jnp.maximum(z * scale + shift, 0.0)                     # relu1

    # fc2
    z = jnp.dot(h.astype(jnp.bfloat16), w2t_ref[...],
                preferred_element_type=jnp.float32)

    # bn2
    s = jnp.sum(z, axis=0, keepdims=True)
    q = jnp.sum(z * z, axis=0, keepdims=True)
    mu = s * inv_n
    var = q * inv_n - mu * mu
    scale = jax.lax.rsqrt(var + BN_EPS) * g2_ref[...]
    shift = b2_ref[...] - mu * scale
    z = z * scale + shift

    if residual:
        z = z + x.astype(jnp.float32)

    o_ref[...] = jnp.maximum(z, 0.0).astype(o_ref.dtype)


# --------------------------------------------------------------------------
# Batch-tiled path (exact full-batch BN via two-pass statistics).
# Grid for stages 1-2: (ncores, n_inner); leading axis "parallel" so v7x's
# two TensorCores each accumulate partial per-feature stats into their own
# (8, Fp) slab (all 8 sublanes hold the same value; consumer sums rows / 8).
# --------------------------------------------------------------------------
def _fc1_stats_kernel(x_ref, w1t_ref, z_ref, s_ref, q_ref):
    i = pl.program_id(1)

    @pl.when(i == 0)
    def _():
        s_ref[...] = jnp.zeros_like(s_ref)
        q_ref[...] = jnp.zeros_like(q_ref)

    z = jnp.dot(x_ref[...], w1t_ref[...], preferred_element_type=jnp.float32)
    zb = z.astype(jnp.bfloat16)
    z_ref[...] = zb                                   # bf16 round-trip to HBM
    zf = zb.astype(jnp.float32)                       # stats match stored vals
    # Padded batch rows of x are zero -> contribute nothing to the sums.
    s_ref[...] += jnp.sum(zf, axis=0, keepdims=True)
    q_ref[...] += jnp.sum(zf * zf, axis=0, keepdims=True)


def _bn1_relu_fc2_stats_kernel(z1_ref, s1_ref, q1_ref, g1_ref, b1_ref, w2t_ref,
                               z2_ref, s2_ref, q2_ref, *, batch, tile,
                               n_inner, masked):
    c = pl.program_id(0)
    i = pl.program_id(1)

    @pl.when(i == 0)
    def _():
        s2_ref[...] = jnp.zeros_like(s2_ref)
        q2_ref[...] = jnp.zeros_like(q2_ref)

    inv_n = jnp.float32(1.0 / batch)
    inv8 = jnp.float32(0.125)
    # Per-core partial sums live duplicated on 8 sublanes -> sum rows, /8.
    s1 = jnp.sum(s1_ref[...], axis=0, keepdims=True) * inv8
    q1 = jnp.sum(q1_ref[...], axis=0, keepdims=True) * inv8
    mu = s1 * inv_n
    var = q1 * inv_n - mu * mu
    scale = jax.lax.rsqrt(var + BN_EPS) * g1_ref[...]
    shift = b1_ref[...] - mu * scale

    h = jnp.maximum(z1_ref[...].astype(jnp.float32) * scale + shift, 0.0)
    if masked:
        # Zero rows beyond the real batch so they don't pollute bn2's stats.
        row = (jax.lax.broadcasted_iota(jnp.int32, h.shape, 0)
               + (c * n_inner + i) * tile)
        h = jnp.where(row < batch, h, 0.0)

    z2 = jnp.dot(h.astype(jnp.bfloat16), w2t_ref[...],
                 preferred_element_type=jnp.float32)
    z2b = z2.astype(jnp.bfloat16)
    z2_ref[...] = z2b
    z2f = z2b.astype(jnp.float32)
    s2_ref[...] += jnp.sum(z2f, axis=0, keepdims=True)
    q2_ref[...] += jnp.sum(z2f * z2f, axis=0, keepdims=True)


def _bn2_res_relu_kernel(*refs, batch, residual):
    if residual:
        z2_ref, s2_ref, q2_ref, g2_ref, b2_ref, x_ref, o_ref = refs
    else:
        z2_ref, s2_ref, q2_ref, g2_ref, b2_ref, o_ref = refs

    inv_n = jnp.float32(1.0 / batch)
    inv8 = jnp.float32(0.125)
    s2 = jnp.sum(s2_ref[...], axis=0, keepdims=True) * inv8
    q2 = jnp.sum(q2_ref[...], axis=0, keepdims=True) * inv8
    mu = s2 * inv_n
    var = q2 * inv_n - mu * mu
    scale = jax.lax.rsqrt(var + BN_EPS) * g2_ref[...]
    shift = b2_ref[...] - mu * scale

    z = z2_ref[...].astype(jnp.float32) * scale + shift
    if residual:
        z = z + x_ref[...].astype(jnp.float32)
    o_ref[...] = jnp.maximum(z, 0.0).astype(o_ref.dtype)


# --------------------------------------------------------------------------
# Wrapper
# --------------------------------------------------------------------------
def resblock_forward(x, w1, g1, b1, w2, g2, b2, *, residual=False,
                     batch_tile=None):
    """x: (B, F). w1, w2: (F, F); g*, b*: (F,)."""
    B, F = x.shape
    Fp = _round_up(F, _LANE)
    out_dtype = x.dtype
    budget = _vmem_budget()

    # One-time wrapper-side prep: pre-transpose weights to (in, out),
    # pad features to a lane-dense multiple of 128, cast to bf16.
    def prep_w(w):
        wt = jnp.pad(w.astype(jnp.float32).T, ((0, Fp - F), (0, Fp - F)))
        return wt.astype(jnp.bfloat16)

    w1t = prep_w(w1)
    w2t = prep_w(w2)
    g1r = jnp.pad(g1.astype(jnp.float32), (0, Fp - F),
                  constant_values=1.0).reshape(1, Fp)
    b1r = jnp.pad(b1.astype(jnp.float32), (0, Fp - F)).reshape(1, Fp)
    g2r = jnp.pad(g2.astype(jnp.float32), (0, Fp - F),
                  constant_values=1.0).reshape(1, Fp)
    b2r = jnp.pad(b2.astype(jnp.float32), (0, Fp - F)).reshape(1, Fp)

    xb = x.astype(jnp.bfloat16)            # MXU LHS / residual only: bf16 ok

    if batch_tile is None:
        # Auto: keep whole batch resident while it fits the generation's VMEM
        # budget, otherwise compute the largest batch tile that fits.
        fused_bytes = (2 * Fp * Fp * 2              # two bf16 weights
                       + B * Fp * (2 + 4 + 3 * 4)   # x bf16, out, f32 temps
                       + (2 << 20))
        if fused_bytes <= budget:
            batch_tile = B
        else:
            avail = budget - Fp * Fp * 2 - (4 << 20)
            tb = (avail // (20 * Fp)) // _BF16_SUBLANE * _BF16_SUBLANE
            batch_tile = int(min(max(tb, _BF16_SUBLANE), 1024))

    vmem_full = pl.BlockSpec(memory_space=pltpu.VMEM)   # resident, single copy

    if batch_tile >= B:
        # ----- single fused call: whole batch resident in VMEM -----
        xp = jnp.pad(xb, ((0, 0), (0, Fp - F)))
        kernel = functools.partial(_fused_block_kernel, batch=B,
                                   residual=residual)
        out = pl.pallas_call(
            kernel,
            out_shape=jax.ShapeDtypeStruct((B, Fp), out_dtype),
            in_specs=[vmem_full] * 7,
            out_specs=vmem_full,
            compiler_params=pltpu.CompilerParams(vmem_limit_bytes=budget),
        )(xp, w1t, g1r, b1r, w2t, g2r, b2r)
        return out[:, :F] if Fp != F else out

    # ----- batch-tiled three-stage path (exact full-batch BN stats) -----
    TB = max(_BF16_SUBLANE, _round_up(min(batch_tile, B), _BF16_SUBLANE))
    Bp = _round_up(B, TB)
    n_tiles = Bp // TB
    masked = Bp != B
    ncores = 2 if n_tiles % 2 == 0 else 1     # megacore split when it divides
    n_inner = n_tiles // ncores
    xp = jnp.pad(xb, ((0, Bp - B), (0, Fp - F)))

    # Row-streamed blocks (2D grid for stages 1-2, 1D grid for stage 3).
    row2 = pl.BlockSpec((TB, Fp), lambda c, i, n=n_inner: (c * n + i, 0))
    row1 = pl.BlockSpec((TB, Fp), lambda i: (i, 0))
    # Per-core partial stats: (ncores*8, Fp), each core owns an (8, Fp) slab.
    stat_out = pl.BlockSpec((8, Fp), lambda c, i: (c, 0))
    stat_shape = jax.ShapeDtypeStruct((ncores * 8, Fp), jnp.float32)

    # Stage 1: fc1 + per-feature sum / sumsq accumulation (z1 stored bf16).
    z1, s1, q1 = pl.pallas_call(
        _fc1_stats_kernel,
        grid=(ncores, n_inner),
        out_shape=(jax.ShapeDtypeStruct((Bp, Fp), jnp.bfloat16),
                   stat_shape, stat_shape),
        in_specs=[row2, vmem_full],
        out_specs=(row2, stat_out, stat_out),
        compiler_params=pltpu.CompilerParams(
            dimension_semantics=("parallel", "arbitrary"),
            vmem_limit_bytes=budget),
    )(xp, w1t)

    # Stage 2: bn1 + relu + fc2 + stats for bn2 (z2 stored bf16).
    kernel2 = functools.partial(_bn1_relu_fc2_stats_kernel, batch=B, tile=TB,
                                n_inner=n_inner, masked=masked)
    z2, s2, q2 = pl.pallas_call(
        kernel2,
        grid=(ncores, n_inner),
        out_shape=(jax.ShapeDtypeStruct((Bp, Fp), jnp.bfloat16),
                   stat_shape, stat_shape),
        in_specs=[row2, vmem_full, vmem_full, vmem_full, vmem_full, vmem_full],
        out_specs=(row2, stat_out, stat_out),
        compiler_params=pltpu.CompilerParams(
            dimension_semantics=("parallel", "arbitrary"),
            vmem_limit_bytes=budget),
    )(z1, s1, q1, g1r, b1r, w2t)

    # Stage 3: bn2 + optional residual + relu (parallel over batch tiles).
    kernel3 = functools.partial(_bn2_res_relu_kernel, batch=B,
                                residual=residual)
    ins = [z2, s2, q2, g2r, b2r] + ([xp] if residual else [])
    in_specs3 = [row1, vmem_full, vmem_full, vmem_full, vmem_full] \
        + ([row1] if residual else [])
    out = pl.pallas_call(
        kernel3,
        grid=(n_tiles,),
        out_shape=jax.ShapeDtypeStruct((Bp, Fp), out_dtype),
        in_specs=in_specs3,
        out_specs=row1,
        compiler_params=pltpu.CompilerParams(
            dimension_semantics=("parallel",), vmem_limit_bytes=budget),
    )(*ins)

    if Bp != B or Fp != F:
        out = out[:B, :F]
    return out


# --------------------------------------------------------------------------
# Reference + init
# --------------------------------------------------------------------------
def resblock_reference(x, w1, g1, b1, w2, g2, b2, *, residual=False):
    def bn(z, g, b):
        mu = jnp.mean(z, axis=0, keepdims=True)
        var = jnp.mean((z - mu) ** 2, axis=0, keepdims=True)
        return (z - mu) / jnp.sqrt(var + BN_EPS) * g + b

    z = x @ w1.T
    z = jnp.maximum(bn(z, g1, b1), 0.0)
    z = z @ w2.T
    z = bn(z, g2, b2)
    if residual:
        z = z + x
    return jnp.maximum(z, 0.0)


def init_params(key, num_features):
    """PyTorch-like defaults: Linear weight ~ U(-1/sqrt(in), 1/sqrt(in));
    BN gamma=1, beta=0."""
    k1, k2 = jax.random.split(key)
    bound = 1.0 / jnp.sqrt(jnp.float32(num_features))
    w1 = jax.random.uniform(k1, (num_features, num_features), jnp.float32,
                            -bound, bound)
    w2 = jax.random.uniform(k2, (num_features, num_features), jnp.float32,
                            -bound, bound)
    g1 = jnp.ones((num_features,), jnp.float32)
    b1 = jnp.zeros((num_features,), jnp.float32)
    g2 = jnp.ones((num_features,), jnp.float32)
    b2 = jnp.zeros((num_features,), jnp.float32)
    return w1, g1, b1, w2, g2, b2


if __name__ == "__main__":
    key = jax.random.PRNGKey(0)
    kx, kp, kx2, kx3 = jax.random.split(key, 4)

    B, F = 8, 32
    x = jax.random.normal(kx, (B, F), jnp.float32)
    w1, g1, b1, w2, g2, b2 = init_params(kp, F)

    # Fused single-call path: plain and residual.
    out_plain = jax.block_until_ready(
        resblock_forward(x, w1, g1, b1, w2, g2, b2, residual=False))
    out_res = jax.block_until_ready(
        resblock_forward(x, w1, g1, b1, w2, g2, b2, residual=True))

    ref_plain = resblock_reference(x, w1, g1, b1, w2, g2, b2, residual=False)
    ref_res = resblock_reference(x, w1, g1, b1, w2, g2, b2, residual=True)
    np.testing.assert_allclose(np.asarray(out_plain), np.asarray(ref_plain),
                               atol=5e-2, rtol=5e-2)
    np.testing.assert_allclose(np.asarray(out_res), np.asarray(ref_res),
                               atol=5e-2, rtol=5e-2)

    # Batch-tiled two-pass-BN path, 2-core stat split + padded-row masking
    # (B=24 -> TB=16, Bp=32, 2 tiles, ncores=2, masked).
    B2 = 24
    x2 = jax.random.normal(kx2, (B2, F), jnp.float32)
    out_tiled = jax.block_until_ready(
        resblock_forward(x2, w1, g1, b1, w2, g2, b2, residual=True,
                         batch_tile=8))
    ref_tiled = resblock_reference(x2, w1, g1, b1, w2, g2, b2, residual=True)
    np.testing.assert_allclose(np.asarray(out_tiled), np.asarray(ref_tiled),
                               atol=5e-2, rtol=5e-2)

    # Batch-tiled path with an odd tile count (ncores=1), no masking.
    B3 = 48
    x3 = jax.random.normal(kx3, (B3, F), jnp.float32)
    out_tiled2 = jax.block_until_ready(
        resblock_forward(x3, w1, g1, b1, w2, g2, b2, residual=False,
                         batch_tile=16))
    ref_tiled2 = resblock_reference(x3, w1, g1, b1, w2, g2, b2, residual=False)
    np.testing.assert_allclose(np.asarray(out_tiled2), np.asarray(ref_tiled2),
                               atol=5e-2, rtol=5e-2)

    assert out_plain.shape == (B, F)
    assert out_res.shape == (B, F)
    assert out_tiled.shape == (B2, F)
    assert out_tiled2.shape == (B3, F)
    print("KERNEL_OK")
</pallas_src>

<mosaic_0001>
module attributes {stable_mosaic.version = 11 : i64} {
  func.func @_fused_block_kernel(%arg0: memref<8x128xbf16, #tpu.memory_space<vmem>>, %arg1: memref<128x128xbf16, #tpu.memory_space<vmem>>, %arg2: memref<1x128xf32, #tpu.memory_space<vmem>>, %arg3: memref<1x128xf32, #tpu.memory_space<vmem>>, %arg4: memref<128x128xbf16, #tpu.memory_space<vmem>>, %arg5: memref<1x128xf32, #tpu.memory_space<vmem>>, %arg6: memref<1x128xf32, #tpu.memory_space<vmem>>, %arg7: memref<8x128xf32, #tpu.memory_space<vmem>>) attributes {dimension_semantics = [], scalar_prefetch = 0 : i64, scratch_operands = 0 : i64, tpu.core_type = #tpu.core_type<tc>} {
    %c0 = arith.constant 0 : index
    %c0_0 = arith.constant 0 : index
    %0 = vector.load %arg0[%c0, %c0_0] : memref<8x128xbf16, #tpu.memory_space<vmem>>, vector<8x128xbf16>
    %c0_1 = arith.constant 0 : index
    %c0_2 = arith.constant 0 : index
    %1 = vector.load %arg1[%c0_1, %c0_2] : memref<128x128xbf16, #tpu.memory_space<vmem>>, vector<128x128xbf16>
    %cst = arith.constant dense<0.000000e+00> : vector<8x128xf32>
    %2 = tpu.matmul %0, %1, %cst {dimension_numbers = #tpu.dot_dimension_numbers<[1], [0], [0], [1], [0, 0, 1, 1], [], []>} : vector<8x128xbf16>, vector<128x128xbf16>, vector<8x128xf32> -> vector<8x128xf32>
    %cst_3 = arith.constant dense<0.000000e+00> : vector<128xf32>
    %3 = vector.multi_reduction <add>, %2, %cst_3 [0] : vector<8x128xf32> to vector<128xf32>
    %4 = vector.shape_cast %3 : vector<128xf32> to vector<1x128xf32>
    %5 = arith.mulf %2, %2 : vector<8x128xf32>
    %cst_4 = arith.constant dense<0.000000e+00> : vector<128xf32>
    %6 = vector.multi_reduction <add>, %5, %cst_4 [0] : vector<8x128xf32> to vector<128xf32>
    %7 = vector.shape_cast %6 : vector<128xf32> to vector<1x128xf32>
    %cst_5 = arith.constant 1.250000e-01 : f32
    %8 = vector.broadcast %cst_5 : f32 to vector<1x128xf32>
    %9 = arith.mulf %4, %8 : vector<1x128xf32>
    %cst_6 = arith.constant 1.250000e-01 : f32
    %10 = vector.broadcast %cst_6 : f32 to vector<1x128xf32>
    %11 = arith.mulf %7, %10 : vector<1x128xf32>
    %12 = arith.mulf %9, %9 : vector<1x128xf32>
    %13 = arith.subf %11, %12 : vector<1x128xf32>
    %cst_7 = arith.constant 9.99999974E-6 : f32
    %14 = vector.broadcast %cst_7 : f32 to vector<1x128xf32>
    %15 = arith.addf %13, %14 : vector<1x128xf32>
    %16 = math.rsqrt %15 : vector<1x128xf32>
    %c0_8 = arith.constant 0 : index
    %c0_9 = arith.constant 0 : index
    %17 = vector.load %arg2[%c0_8, %c0_9] : memref<1x128xf32, #tpu.memory_space<vmem>>, vector<1x128xf32>
    %18 = arith.mulf %16, %17 : vector<1x128xf32>
    %c0_10 = arith.constant 0 : index
    %c0_11 = arith.constant 0 : index
    %19 = vector.load %arg3[%c0_10, %c0_11] : memref<1x128xf32, #tpu.memory_space<vmem>>, vector<1x128xf32>
    %20 = arith.mulf %9, %18 : vector<1x128xf32>
    %21 = arith.subf %19, %20 : vector<1x128xf32>
    %22 = vector.broadcast %18 : vector<1x128xf32> to vector<8x128xf32>
    %23 = arith.mulf %2, %22 : vector<8x128xf32>
    %24 = vector.broadcast %21 : vector<1x128xf32> to vector<8x128xf32>
    %25 = arith.addf %23, %24 : vector<8x128xf32>
    %cst_12 = arith.constant 0.000000e+00 : f32
    %26 = vector.broadcast %cst_12 : f32 to vector<8x128xf32>
    %27 = arith.maximumf %25, %26 : vector<8x128xf32>
    %28 = arith.truncf %27 : vector<8x128xf32> to vector<8x128xbf16>
    %c0_13 = arith.constant 0 : index
    %c0_14 = arith.constant 0 : index
    %29 = vector.load %arg4[%c0_13, %c0_14] : memref<128x128xbf16, #tpu.memory_space<vmem>>, vector<128x128xbf16>
    %cst_15 = arith.constant dense<0.000000e+00> : vector<8x128xf32>
    %30 = tpu.matmul %28, %29, %cst_15 {dimension_numbers = #tpu.dot_dimension_numbers<[1], [0], [0], [1], [0, 0, 1, 1], [], []>} : vector<8x128xbf16>, vector<128x128xbf16>, vector<8x128xf32> -> vector<8x128xf32>
    %cst_16 = arith.constant dense<0.000000e+00> : vector<128xf32>
    %31 = vector.multi_reduction <add>, %30, %cst_16 [0] : vector<8x128xf32> to vector<128xf32>
    %32 = vector.shape_cast %31 : vector<128xf32> to vector<1x128xf32>
    %33 = arith.mulf %30, %30 : vector<8x128xf32>
    %cst_17 = arith.constant dense<0.000000e+00> : vector<128xf32>
    %34 = vector.multi_reduction <add>, %33, %cst_17 [0] : vector<8x128xf32> to vector<128xf32>
    %35 = vector.shape_cast %34 : vector<128xf32> to vector<1x128xf32>
    %cst_18 = arith.constant 1.250000e-01 : f32
    %36 = vector.broadcast %cst_18 : f32 to vector<1x128xf32>
    %37 = arith.mulf %32, %36 : vector<1x128xf32>
    %cst_19 = arith.constant 1.250000e-01 : f32
    %38 = vector.broadcast %cst_19 : f32 to vector<1x128xf32>
    %39 = arith.mulf %35, %38 : vector<1x128xf32>
    %40 = arith.mulf %37, %37 : vector<1x128xf32>
    %41 = arith.subf %39, %40 : vector<1x128xf32>
    %cst_20 = arith.constant 9.99999974E-6 : f32
    %42 = vector.broadcast %cst_20 : f32 to vector<1x128xf32>
    %43 = arith.addf %41, %42 : vector<1x128xf32>
    %44 = math.rsqrt %43 : vector<1x128xf32>
    %c0_21 = arith.constant 0 : index
    %c0_22 = arith.constant 0 : index
    %45 = vector.load %arg5[%c0_21, %c0_22] : memref<1x128xf32, #tpu.memory_space<vmem>>, vector<1x128xf32>
    %46 = arith.mulf %44, %45 : vector<1x128xf32>
    %c0_23 = arith.constant 0 : index
    %c0_24 = arith.constant 0 : index
    %47 = vector.load %arg6[%c0_23, %c0_24] : memref<1x128xf32, #tpu.memory_space<vmem>>, vector<1x128xf32>
    %48 = arith.mulf %37, %46 : vector<1x128xf32>
    %49 = arith.subf %47, %48 : vector<1x128xf32>
    %50 = vector.broadcast %46 : vector<1x128xf32> to vector<8x128xf32>
    %51 = arith.mulf %30, %50 : vector<8x128xf32>
    %52 = vector.broadcast %49 : vector<1x128xf32> to vector<8x128xf32>
    %53 = arith.addf %51, %52 : vector<8x128xf32>
    %cst_25 = arith.constant 0.000000e+00 : f32
    %54 = vector.broadcast %cst_25 : f32 to vector<8x128xf32>
    %55 = arith.maximumf %53, %54 : vector<8x128xf32>
    %c0_26 = arith.constant 0 : index
    %c0_27 = arith.constant 0 : index
    %56 = vector.load %arg7[%c0_26, %c0_27] : memref<8x128xf32, #tpu.memory_space<vmem>>, vector<8x128xf32>
    tpu.vector_store %arg7[%c0_26, %c0_27], %55 {strides = array<i32>} : memref<8x128xf32, #tpu.memory_space<vmem>>, vector<8x128xf32>,
    return
  }
}

</mosaic_0001>

<llo_original>
// kernel: tpu_custom_call.1
$region0: #{tpu_custom_call.1}
  #allocation0 [shape = 'u32[]', space=smem, size = 0x4, offset = 0x4, fixed_abs, tag = 'smem constant byte address 0x4 - core index']
  #allocation1 [shape = 'u32[72,128]{1,0:T(1,128)}', space=vmem, size = 0x9000, scoped, tag = 'internal scratch']
  %s0 = inlined_call_operand.hbm [shape: bf16[8,128], index: 0, kind: input, shape index: {}]
  %s1 = inlined_call_operand.hbm [shape: bf16[128,128], index: 1, kind: input, shape index: {}]
  %s2 = inlined_call_operand.vmem [shape: f32[1,128], index: 2, kind: input, shape index: {}]
  %s3 = inlined_call_operand.vmem [shape: f32[1,128], index: 3, kind: input, shape index: {}]
  %s4 = inlined_call_operand.hbm [shape: bf16[128,128], index: 4, kind: input, shape index: {}]
  %s5 = inlined_call_operand.vmem [shape: f32[1,128], index: 5, kind: input, shape index: {}]
  %s6 = inlined_call_operand.vmem [shape: f32[1,128], index: 6, kind: input, shape index: {}]
  %s7 = inlined_call_operand.hbm [shape: f32[8,128], index: 7, kind: output, shape index: {}]
  %s8 = sld [smem:[#allocation0]]
  $region50: #{tpu_custom_call.1} parent=0
    _
  %s10 = ssub.s32 1, %s8
  %s11 = scalar_select 0, %s10, %s8
  $region1: #{tpu_custom_call.1} parent=0
    #allocation2 [shape = 'u8[2048]{0}', space=vmem, size = 0x800, scoped, tag = 'input window, operand 0, single buffered']
    #allocation3 [shape = 's32[1]{0}', space=sflag, size = 0x4, scoped, tag = 'scoped memory for tpu_custom_call.1']
    #allocation4 [shape = 's32[1]{0}', space=sflag, size = 0x4, scoped, tag = 'scoped memory for tpu_custom_call.1']
    #allocation5 [shape = 'u8[32768]{0}', space=vmem, size = 0x8000, scoped, tag = 'input window, operand 1, single buffered']
    #allocation6 [shape = 's32[1]{0}', space=sflag, size = 0x4, scoped, tag = 'scoped memory for tpu_custom_call.1']
    #allocation7 [shape = 'u8[32768]{0}', space=vmem, size = 0x8000, scoped, tag = 'input window, operand 4, single buffered']
    #allocation8 [shape = 'u8[4096]{0}', space=vmem, size = 0x1000, scoped, tag = 'output window, operand 0, single buffered']
    %12 = vsyncpa [#allocation3], 0
    %13 = vsyncpa [#allocation6], 0
    %14 = vsyncpa [#allocation4], 0
    // Predicated region
    $region2: #{tpu_custom_call.1} parent=1 // pred_check
      _
    $region3: #{tpu_custom_call.1} parent=1 // pred_check_branch
      %16 = sbr.rel (0) target = $region5
    $region4: #{tpu_custom_call.1} parent=1 // pred_region
      %18 = vsyncadd [#allocation3], 0
      %s20 = sshll.u32 %s0, 4
      %s21 = int_to_ptr.hbm [resolvable:$true] %s20
      %s22 = sshll.u32 [#allocation2], 4
      %s23 = int_to_ptr.vmem [resolvable:$true] %s22
      %25 = dma.hbm_to_vmem [thread:$0]  %s21, 64, %s23, [#allocation3]
    $region5: #{tpu_custom_call.1} parent=1 // pred_fallthru
      _
    // Predicated region
    $region6: #{tpu_custom_call.1} parent=1 // pred_check
      _
    $region7: #{tpu_custom_call.1} parent=1 // pred_check_branch
      %27 = sbr.rel (0) target = $region9
    $region8: #{tpu_custom_call.1} parent=1 // pred_region
      %29 = vsyncadd [#allocation6], 0
      %s30 = sshll.u32 %s1, 4
      %s31 = int_to_ptr.hbm [resolvable:$true] %s30
      %s32 = sshll.u32 [#allocation5], 4
      %s33 = int_to_ptr.vmem [resolvable:$true] %s32
      %38 = dma.hbm_to_vmem [thread:$0]  %s31, 1024, %s33, [#allocation6], 64, 64, 4
    $region9: #{tpu_custom_call.1} parent=1 // pred_fallthru
      _
    // Predicated region
    $region10: #{tpu_custom_call.1} parent=1 // pred_check
      _
    $region11: #{tpu_custom_call.1} parent=1 // pred_check_branch
      %40 = sbr.rel (0) target = $region13
    $region12: #{tpu_custom_call.1} parent=1 // pred_region
      _
    $region13: #{tpu_custom_call.1} parent=1 // pred_fallthru
      _
    // Predicated region
    $region14: #{tpu_custom_call.1} parent=1 // pred_check
      _
    $region15: #{tpu_custom_call.1} parent=1 // pred_check_branch
      %42 = sbr.rel (0) target = $region17
    $region16: #{tpu_custom_call.1} parent=1 // pred_region
      _
    $region17: #{tpu_custom_call.1} parent=1 // pred_fallthru
      _
    // Predicated region
    $region18: #{tpu_custom_call.1} parent=1 // pred_check
      _
    $region19: #{tpu_custom_call.1} parent=1 // pred_check_branch
      %44 = sbr.rel (0) target = $region21
    $region20: #{tpu_custom_call.1} parent=1 // pred_region
      %46 = vsyncadd [#allocation6], 0
      %s47 = sshll.u32 %s4, 4
      %s48 = int_to_ptr.hbm [resolvable:$true] %s47
      %s49 = sshll.u32 [#allocation7], 4
      %s50 = int_to_ptr.vmem [resolvable:$true] %s49
      %55 = dma.hbm_to_vmem [thread:$0]  %s48, 1024, %s50, [#allocation6], 64, 64, 4
    $region21: #{tpu_custom_call.1} parent=1 // pred_fallthru
      _
    // Predicated region
    $region22: #{tpu_custom_call.1} parent=1 // pred_check
      _
    $region23: #{tpu_custom_call.1} parent=1 // pred_check_branch
      %57 = sbr.rel (0) target = $region25
    $region24: #{tpu_custom_call.1} parent=1 // pred_region
      _
    $region25: #{tpu_custom_call.1} parent=1 // pred_fallthru
      _
    // Predicated region
    $region26: #{tpu_custom_call.1} parent=1 // pred_check
      _
    $region27: #{tpu_custom_call.1} parent=1 // pred_check_branch
      %59 = sbr.rel (0) target = $region29
    $region28: #{tpu_custom_call.1} parent=1 // pred_region
      _
    $region29: #{tpu_custom_call.1} parent=1 // pred_fallthru
      _
    // Predicated region
    $region30: #{tpu_custom_call.1} parent=1 // pred_check
      _
    $region31: #{tpu_custom_call.1} parent=1 // pred_check_branch
      %61 = sbr.rel (0) target = $region33
    $region32: #{tpu_custom_call.1} parent=1 // pred_region
      %63 = dma.done [#allocation3], 64
    $region33: #{tpu_custom_call.1} parent=1 // pred_fallthru
      _
    // Predicated region
    $region34: #{tpu_custom_call.1} parent=1 // pred_check
      _
    $region35: #{tpu_custom_call.1} parent=1 // pred_check_branch
      %65 = sbr.rel (0) target = $region37
    $region36: #{tpu_custom_call.1} parent=1 // pred_region
      %67 = dma.done [#allocation6], 1024
    $region37: #{tpu_custom_call.1} parent=1 // pred_fallthru
      _
    // Predicated region
    $region38: #{tpu_custom_call.1} parent=1 // pred_check
      _
    $region39: #{tpu_custom_call.1} parent=1 // pred_check_branch
      %69 = sbr.rel (0) target = $region41
    $region40: #{tpu_custom_call.1} parent=1 // pred_region
      %71 = dma.done [#allocation6], 1024
    $region41: #{tpu_custom_call.1} parent=1 // pred_fallthru
      _
    %v72 = vld [vmem:[#allocation2] sm:$0xf]
    %v73 = vld [vmem:[#allocation5] sm:$0xf]
    %v74 = vld [vmem:[#allocation5 + $0x4] sm:$0xf]
    %v75 = vld [vmem:[#allocation5 + $0x8] sm:$0xf]
    %v76 = vld [vmem:[#allocation5 + $0xc] sm:$0xf]
    %v77 = vld [vmem:[#allocation5 + $0x10] sm:$0xf]
    %v78 = vld [vmem:[#allocation5 + $0x14] sm:$0xf]
    %v79 = vld [vmem:[#allocation5 + $0x18] sm:$0xf]
    %v80 = vld [vmem:[#allocation5 + $0x1c] sm:$0xf]
    %v81 = vld [vmem:[#allocation5 + $0x20] sm:$0xf]
    %v82 = vld [vmem:[#allocation5 + $0x24] sm:$0xf]
    %v83 = vld [vmem:[#allocation5 + $0x28] sm:$0xf]
    %v84 = vld [vmem:[#allocation5 + $0x2c] sm:$0xf]
    %v85 = vld [vmem:[#allocation5 + $0x30] sm:$0xf]
    %v86 = vld [vmem:[#allocation5 + $0x34] sm:$0xf]
    %v87 = vld [vmem:[#allocation5 + $0x38] sm:$0xf]
    %v88 = vld [vmem:[#allocation5 + $0x3c] sm:$0xf]
    %v105 = vunpack.c.l.b16 %v73
    %v106 = vunpack.c.l.b16 %v74
    %v107 = vunpack.c.l.b16 %v75
    %v108 = vunpack.c.l.b16 %v76
    %v109 = vunpack.c.l.b16 %v77
    %v110 = vunpack.c.l.b16 %v78
    %v111 = vunpack.c.l.b16 %v79
    %v112 = vunpack.c.l.b16 %v80
    %v113 = vunpack.c.l.b16 %v81
    %v114 = vunpack.c.l.b16 %v82
    %v115 = vunpack.c.l.b16 %v83
    %v116 = vunpack.c.l.b16 %v84
    %v117 = vunpack.c.l.b16 %v85
    %v118 = vunpack.c.l.b16 %v86
    %v119 = vunpack.c.l.b16 %v87
    %v120 = vunpack.c.l.b16 %v88
    %v121 = vpack.c.b16 %v106, %v105
    %v122 = vpack.c.b16 %v108, %v107
    %v123 = vpack.c.b16 %v110, %v109
    %v124 = vpack.c.b16 %v112, %v111
    %v125 = vpack.c.b16 %v114, %v113
    %v126 = vpack.c.b16 %v116, %v115
    %v127 = vpack.c.b16 %v118, %v117
    %v128 = vpack.c.b16 %v120, %v119
    %137 = vmatpush.bf16.msra.mxu0 %v128
    %138 = vmatpush.bf16.msra.mxu0 %v127
    %139 = vmatpush.bf16.msra.mxu0 %v126
    %140 = vmatpush.bf16.msra.mxu0 %v125
    %141 = vmatpush.bf16.msra.mxu0 %v124
    %142 = vmatpush.bf16.msra.mxu0 %v123
    %143 = vmatpush.bf16.msra.mxu0 %v122
    %144 = vmatpush.bf16.msra.mxu0 %v121
    %145 = vmatmul.bf16.gmra.mxu0 %v72
    %v146 = vpop.f32.mrf.mxu0
    %v147 = vadd.f32 0.0, %v146
    %v148 = vpop.f32.mrf.mxu0
    %149 = vdwg.mxu0
    %v150 = vrot.slane %v147, 4
    %v151 = vadd.f32 %v147, %v150
    %v152 = vrot.slane %v151, 2
    %v153 = vadd.f32 %v151, %v152
    %v154 = vrot.slane %v153, 1
    %v155 = vadd.f32 %v153, %v154
    %v156 = vmul.f32 %v147, %v147
    %v157 = vrot.slane %v156, 4
    %v158 = vadd.f32 %v156, %v157
    %v159 = vrot.slane %v158, 2
    %v160 = vadd.f32 %v158, %v159
    %v161 = vrot.slane %v160, 1
    %v162 = vadd.f32 %v160, %v161
    %v163 = vmul.f32 %v155, 0.125
    %v164 = vmul.f32 %v162, 0.125
    %v165 = vmul.f32 %v163, %v163
    %v166 = vsub.f32 %v164, %v165
    %v167 = vadd.f32 %v166, 1e-05
    %v168 = vrsqrt.pop %v167
    %v169 = vmul.f32 %v168, %v167
    %v170 = vmul.f32 %v169, %v168
    %v171 = vmul.f32 0.5, %v170
    %v172 = vsub.f32 1.5, %v171
    %v173 = vmul.f32 %v168, %v172
    %vm174 = vweird.f32 %v167
    %vm175 = vweird.f32 %v168
    %vm176 = vmor %vm174, %vm175
    %v177 = vsel %vm176, %v168, %v173
    %v178 = vld [vmem:[%s2] sm:$0x1]
    %v179 = vmul.f32 %v177, %v178
    %v180 = vld [vmem:[%s3] sm:$0x1]
    %v181 = vmul.f32 %v163, %v179
    %v182 = vsub.f32 %v180, %v181
    %v183 = vperm.slane %v179, 0
    %v184 = vmul.f32 %v147, %v183
    %v186 = vperm.slane %v182, 0
    %v188 = vadd.f32 %v184, %v186
    %v189 = vmax.f32 %v188, 0.0
    %v190 = vpack.c.bf16 %v189, %v189
    %v191 = vld [vmem:[#allocation7] sm:$0xf]
    %v192 = vld [vmem:[#allocation7 + $0x4] sm:$0xf]
    %v193 = vld [vmem:[#allocation7 + $0x8] sm:$0xf]
    %v194 = vld [vmem:[#allocation7 + $0xc] sm:$0xf]
    %v195 = vld [vmem:[#allocation7 + $0x10] sm:$0xf]
    %v196 = vld [vmem:[#allocation7 + $0x14] sm:$0xf]
    %v197 = vld [vmem:[#allocation7 + $0x18] sm:$0xf]
    %v198 = vld [vmem:[#allocation7 + $0x1c] sm:$0xf]
    %v199 = vld [vmem:[#allocation7 + $0x20] sm:$0xf]
    %v200 = vld [vmem:[#allocation7 + $0x24] sm:$0xf]
    %v201 = vld [vmem:[#allocation7 + $0x28] sm:$0xf]
    %v202 = vld [vmem:[#allocation7 + $0x2c] sm:$0xf]
    %v203 = vld [vmem:[#allocation7 + $0x30] sm:$0xf]
    %v204 = vld [vmem:[#allocation7 + $0x34] sm:$0xf]
    %v205 = vld [vmem:[#allocation7 + $0x38] sm:$0xf]
    %v206 = vld [vmem:[#allocation7 + $0x3c] sm:$0xf]
    %v223 = vunpack.c.l.b16 %v191
    %v224 = vunpack.c.l.b16 %v192
    %v225 = vunpack.c.l.b16 %v193
    %v226 = vunpack.c.l.b16 %v194
    %v227 = vunpack.c.l.b16 %v195
    %v228 = vunpack.c.l.b16 %v196
    %v229 = vunpack.c.l.b16 %v197
    %v230 = vunpack.c.l.b16 %v198
    %v231 = vunpack.c.l.b16 %v199
    %v232 = vunpack.c.l.b16 %v200
    %v233 = vunpack.c.l.b16 %v201
    %v234 = vunpack.c.l.b16 %v202
    %v235 = vunpack.c.l.b16 %v203
    %v236 = vunpack.c.l.b16 %v204
    %v237 = vunpack.c.l.b16 %v205
    %v238 = vunpack.c.l.b16 %v206
    %v239 = vpack.c.b16 %v224, %v223
    %v240 = vpack.c.b16 %v226, %v225
    %v241 = vpack.c.b16 %v228, %v227
    %v242 = vpack.c.b16 %v230, %v229
    %v243 = vpack.c.b16 %v232, %v231
    %v244 = vpack.c.b16 %v234, %v233
    %v245 = vpack.c.b16 %v236, %v235
    %v246 = vpack.c.b16 %v238, %v237
    %255 = vmatpush.bf16.msra.mxu0 %v246
    %256 = vmatpush.bf16.msra.mxu0 %v245
    %257 = vmatpush.bf16.msra.mxu0 %v244
    %258 = vmatpush.bf16.msra.mxu0 %v243
    %259 = vmatpush.bf16.msra.mxu0 %v242
    %260 = vmatpush.bf16.msra.mxu0 %v241
    %261 = vmatpush.bf16.msra.mxu0 %v240
    %262 = vmatpush.bf16.msra.mxu0 %v239
    %263 = vmatmul.bf16.gmra.mxu0 %v190
    %v264 = vpop.f32.mrf.mxu0
    %v265 = vadd.f32 0.0, %v264
    %v266 = vpop.f32.mrf.mxu0
    %267 = vdwg.mxu0
    %v268 = vrot.slane %v265, 4
    %v269 = vadd.f32 %v265, %v268
    %v270 = vrot.slane %v269, 2
    %v271 = vadd.f32 %v269, %v270
    %v272 = vrot.slane %v271, 1
    %v273 = vadd.f32 %v271, %v272
    %v274 = vmul.f32 %v265, %v265
    %v275 = vrot.slane %v274, 4
    %v276 = vadd.f32 %v274, %v275
    %v277 = vrot.slane %v276, 2
    %v278 = vadd.f32 %v276, %v277
    %v279 = vrot.slane %v278, 1
    %v280 = vadd.f32 %v278, %v279
    %v281 = vmul.f32 %v273, 0.125
    %v282 = vmul.f32 %v280, 0.125
    %v283 = vmul.f32 %v281, %v281
    %v284 = vsub.f32 %v282, %v283
    %v285 = vadd.f32 %v284, 1e-05
    %v286 = vrsqrt.pop %v285
    %v287 = vmul.f32 %v286, %v285
    %v288 = vmul.f32 %v287, %v286
    %v289 = vmul.f32 0.5, %v288
    %v290 = vsub.f32 1.5, %v289
    %v291 = vmul.f32 %v286, %v290
    %vm292 = vweird.f32 %v285
    %vm293 = vweird.f32 %v286
    %vm294 = vmor %vm292, %vm293
    %v295 = vsel %vm294, %v286, %v291
    %v296 = vld [vmem:[%s5] sm:$0x1]
    %v297 = vmul.f32 %v295, %v296
    %v298 = vld [vmem:[%s6] sm:$0x1]
    %v299 = vmul.f32 %v281, %v297
    %v300 = vsub.f32 %v298, %v299
    %v301 = vperm.slane %v297, 0
    %v302 = vmul.f32 %v265, %v301
    %v304 = vperm.slane %v300, 0
    %v306 = vadd.f32 %v302, %v304
    %v307 = vmax.f32 %v306, 0.0
    %308 = vst [vmem:[#allocation8] sm:$0xff] %v307
    // Predicated region
    $region42: #{tpu_custom_call.1} parent=1 // pred_check
      _
    $region43: #{tpu_custom_call.1} parent=1 // pred_check_branch
      %310 = sbr.rel (0) target = $region45
    $region44: #{tpu_custom_call.1} parent=1 // pred_region
      %312 = vsyncadd [#allocation4], 0
      %s314 = sshll.u32 [#allocation8], 4
      %s315 = int_to_ptr.vmem [resolvable:$true] %s314
      %s316 = sshll.u32 %s7, 4
      %s317 = int_to_ptr.hbm [resolvable:$true] %s316
      %319 = dma.vmem_to_hbm [thread:$0]  %s315, 128, %s317, [#allocation4]
    $region45: #{tpu_custom_call.1} parent=1 // pred_fallthru
      _
    // Predicated region
    $region46: #{tpu_custom_call.1} parent=1 // pred_check
      _
    $region47: #{tpu_custom_call.1} parent=1 // pred_check_branch
      %321 = sbr.rel (0) target = $region49
    $region48: #{tpu_custom_call.1} parent=1 // pred_region
      %323 = dma.done [#allocation4], 128
    $region49: #{tpu_custom_call.1} parent=1 // pred_fallthru
      _
    %324 = vsyncpa [#allocation3], 1
    %325 = vsyncpa [#allocation6], 1
    %326 = vsyncpa [#allocation4], 1

</llo_original>
